<compile_context>
chip_gen: v6e
topology: v6e:2x2x1
jax: 0.10.0
libtpu: 0.0.40
codegen_flags: <defaults>
</compile_context>

<pallas_src>
import jax
import jax.numpy as jnp
from jax.experimental import pallas as pl
from jax.experimental.pallas import tpu as pltpu


def _dropout_kernel(mask_ref, noised_ref, cover_ref, out_ref):
    # mask_ref:   (1, L)      resident keep-mask (same dtype as the images)
    # noised_ref: (tile_r, L) VMEM tile of the noised image rows
    # cover_ref:  (tile_r, L) VMEM tile of the cover image rows
    keep = mask_ref[...] != 0                        # broadcasts over rows
    out_ref[...] = jnp.where(keep, noised_ref[...], cover_ref[...])


def _pick_row_tile(num_rows, bytes_per_row, target_bytes=2 * 1024 * 1024):
    """Largest row-tile that (a) divides num_rows, (b) is lane/tiling friendly
    (== num_rows or a multiple of 8), and (c) keeps a buffer <= target_bytes."""
    if num_rows * bytes_per_row <= target_bytes:
        return num_rows
    best = None
    for d in range(num_rows, 0, -1):
        if num_rows % d != 0:
            continue
        if d != num_rows and d % 8 != 0:
            continue
        if d * bytes_per_row <= target_bytes:
            best = d
            break
    return best if best is not None else num_rows


def dropout_noise(noised, cover, keep_ratio_range, key):
    """Returns [blended, cover], matching the PyTorch module's output list."""
    B, C, H, W = noised.shape
    keep_min, keep_max = keep_ratio_range
    kp, km = jax.random.split(key)

    # mask_percent ~ U(keep_min, keep_max); P(keep noised pixel) = mask_percent
    mask_percent = jax.random.uniform(
        kp, (), jnp.float32, minval=keep_min, maxval=keep_max)
    # (H*W,) spatial keep-mask, shared across batch and channel.
    keep_mask = jax.random.uniform(km, (H * W,), jnp.float32) < mask_percent
    mask2d = keep_mask.astype(noised.dtype).reshape(1, H * W)

    # Flatten to lane-dense 2D layout: rows = (b, c) pairs, cols = spatial.
    R, L = B * C, H * W
    n2 = noised.reshape(R, L)
    c2 = cover.reshape(R, L)

    bytes_per_row = L * noised.dtype.itemsize
    tile_r = _pick_row_tile(R, bytes_per_row)
    grid = (R // tile_r,)

    out2 = pl.pallas_call(
        _dropout_kernel,
        out_shape=jax.ShapeDtypeStruct((R, L), noised.dtype),
        grid=grid,
        in_specs=[
            # Constant index_map -> mask stays resident in VMEM, never re-DMA'd.
            pl.BlockSpec((1, L), lambda i: (0, 0)),
            pl.BlockSpec((tile_r, L), lambda i: (i, 0)),
            pl.BlockSpec((tile_r, L), lambda i: (i, 0)),
        ],
        out_specs=pl.BlockSpec((tile_r, L), lambda i: (i, 0)),
        compiler_params=pltpu.CompilerParams(
            dimension_semantics=("parallel",)),   # no stateful PRNG -> safe
    )(mask2d, n2, c2)

    blended = out2.reshape(B, C, H, W)
    return [blended, cover]


if __name__ == "__main__":
    key = jax.random.PRNGKey(0)
    k_n, k_c, k_noise = jax.random.split(key, 3)

    B, C, H, W = 2, 4, 16, 16
    noised = jax.random.normal(k_n, (B, C, H, W), jnp.float32)
    cover = jax.random.normal(k_c, (B, C, H, W), jnp.float32)
    keep_ratio_range = (0.5, 0.9)

    out_noised, out_cover = dropout_noise(noised, cover, keep_ratio_range, k_noise)
    jax.block_until_ready(out_noised)
    jax.block_until_ready(out_cover)

    # sanity: every output pixel is either the noised or the cover pixel,
    # and the chosen source is identical across batch and channel.
    is_noised = jnp.isclose(out_noised, noised)
    is_cover = jnp.isclose(out_noised, cover)
    assert bool(jnp.all(is_noised | is_cover))
    sel = is_noised[0, 0]
    assert bool(jnp.all(is_noised == sel[None, None, :, :]))
    assert bool(jnp.allclose(out_cover, cover))

    print("KERNEL_OK")
</pallas_src>

<mosaic_0001>
module attributes {stable_mosaic.version = 11 : i64} {
  func.func @_dropout_kernel(%arg0: i32, %arg1: memref<1x256xf32, #tpu.memory_space<vmem>>, %arg2: memref<8x256xf32, #tpu.memory_space<vmem>>, %arg3: memref<8x256xf32, #tpu.memory_space<vmem>>, %arg4: memref<8x256xf32, #tpu.memory_space<vmem>>) attributes {dimension_semantics = [#tpu.dimension_semantics<parallel>], iteration_bounds = array<i64: 1>, scalar_prefetch = 0 : i64, scratch_operands = 0 : i64, tpu.core_type = #tpu.core_type<tc>, window_params = [{pipeline_mode = #tpu.pipeline_mode<synchronous>, transform_indices = @transform_0, window_bounds = array<i64: 1, 256>}, {transform_indices = @transform_1, window_bounds = array<i64: 8, 256>}, {transform_indices = @transform_2, window_bounds = array<i64: 8, 256>}, {transform_indices = @transform_3, window_bounds = array<i64: 8, 256>}]} {
    %c0 = arith.constant 0 : index
    %c0_0 = arith.constant 0 : index
    %0 = vector.load %arg1[%c0, %c0_0] : memref<1x256xf32, #tpu.memory_space<vmem>>, vector<1x256xf32>
    %cst = arith.constant 0.000000e+00 : f32
    %1 = vector.broadcast %cst : f32 to vector<1x256xf32>
    %2 = arith.cmpf one, %0, %1 : vector<1x256xf32>
    %c0_1 = arith.constant 0 : index
    %c0_2 = arith.constant 0 : index
    %3 = vector.load %arg2[%c0_1, %c0_2] : memref<8x256xf32, #tpu.memory_space<vmem>>, vector<8x256xf32>
    %c0_3 = arith.constant 0 : index
    %c0_4 = arith.constant 0 : index
    %4 = vector.load %arg3[%c0_3, %c0_4] : memref<8x256xf32, #tpu.memory_space<vmem>>, vector<8x256xf32>
    %5 = vector.shape_cast %2 : vector<1x256xi1> to vector<1x256xi1>
    %6 = vector.broadcast %5 : vector<1x256xi1> to vector<8x256xi1>
    %7 = arith.select %6, %3, %4 : vector<8x256xi1>, vector<8x256xf32>
    %c0_5 = arith.constant 0 : index
    %c0_6 = arith.constant 0 : index
    %8 = vector.load %arg4[%c0_5, %c0_6] : memref<8x256xf32, #tpu.memory_space<vmem>>, vector<8x256xf32>
    tpu.vector_store %arg4[%c0_5, %c0_6], %7 {strides = array<i32>} : memref<8x256xf32, #tpu.memory_space<vmem>>, vector<8x256xf32>,
    return
  }
  func.func @transform_0(%arg0: i32) -> (i32, i32) {
    %c0_i32 = arith.constant 0 : i32
    %c0_i32_0 = arith.constant 0 : i32
    %c0_i32_1 = arith.constant 0 : i32
    return %c0_i32, %c0_i32_0 : i32, i32
  }
  func.func @transform_1(%arg0: i32) -> (i32, i32) {
    %c0_i32 = arith.constant 0 : i32
    %c0_i32_0 = arith.constant 0 : i32
    return %arg0, %c0_i32 : i32, i32
  }
  func.func @transform_2(%arg0: i32) -> (i32, i32) {
    %c0_i32 = arith.constant 0 : i32
    %c0_i32_0 = arith.constant 0 : i32
    return %arg0, %c0_i32 : i32, i32
  }
  func.func @transform_3(%arg0: i32) -> (i32, i32) {
    %c0_i32 = arith.constant 0 : i32
    %c0_i32_0 = arith.constant 0 : i32
    return %arg0, %c0_i32 : i32, i32
  }
}

</mosaic_0001>

<llo_original>
// kernel: tpu_custom_call.1
$region0: #{tpu_custom_call.1}
  #allocation0 [shape = 'u32[]', space=smem, size = 0x4, offset = 0x4, fixed_abs, tag = 'smem constant byte address 0x4 - core index']
  #allocation1 [shape = 'u32[144,128]{1,0:T(1,128)}', space=vmem, size = 0x12000, scoped, tag = 'internal scratch']
  %s0 = inlined_call_operand.hbm [shape: f32[1,256], index: 0, kind: input, shape index: {}]
  %s1 = inlined_call_operand.hbm [shape: f32[8,256], index: 1, kind: input, shape index: {}]
  %s2 = inlined_call_operand.hbm [shape: f32[8,256], index: 2, kind: input, shape index: {}]
  %s3 = inlined_call_operand.hbm [shape: f32[8,256], index: 3, kind: output, shape index: {}]
  %s4 = sld [smem:[#allocation0]]
  $region34: #{tpu_custom_call.1} parent=0
    _
  %s6 = ssub.s32 1, %s4
  %s7 = scalar_select 0, %s6, %s4
  $region1: #{tpu_custom_call.1} parent=0
    #allocation2 [shape = 'u8[1024]{0}', space=vmem, size = 0x400, scoped, tag = 'input window, operand 0, single buffered']
    #allocation3 [shape = 's32[1]{0}', space=sflag, size = 0x4, scoped, tag = 'scoped memory for tpu_custom_call.1']
    #allocation4 [shape = 's32[1]{0}', space=sflag, size = 0x4, scoped, tag = 'scoped memory for tpu_custom_call.1']
    #allocation5 [shape = 'u8[8192]{0}', space=vmem, size = 0x2000, scoped, tag = 'input window, operand 1, single buffered']
    #allocation6 [shape = 's32[1]{0}', space=sflag, size = 0x4, scoped, tag = 'scoped memory for tpu_custom_call.1']
    #allocation7 [shape = 'u8[8192]{0}', space=vmem, size = 0x2000, scoped, tag = 'input window, operand 2, single buffered']
    #allocation8 [shape = 'u8[8192]{0}', space=vmem, size = 0x2000, scoped, tag = 'output window, operand 0, single buffered']
    %8 = vsyncpa [#allocation3], 0
    %9 = vsyncpa [#allocation6], 0
    %10 = vsyncpa [#allocation4], 0
    // Predicated region
    $region2: #{tpu_custom_call.1} parent=1 // pred_check
      _
    $region3: #{tpu_custom_call.1} parent=1 // pred_check_branch
      %12 = sbr.rel (0) target = $region5
    $region4: #{tpu_custom_call.1} parent=1 // pred_region
      %s14 = ssub.s32 32, 32
      %15 = vsyncadd [#allocation3], %s14
      %s17 = sshll.u32 [#allocation2], 4
      %s18 = int_to_ptr.vmem [resolvable:$true] %s17
      %20 = dma.hbm_to_vmem [thread:$0]  %s0, 32, %s18, [#allocation3]
    $region5: #{tpu_custom_call.1} parent=1 // pred_fallthru
      _
    // Predicated region
    $region6: #{tpu_custom_call.1} parent=1 // pred_check
      _
    $region7: #{tpu_custom_call.1} parent=1 // pred_check_branch
      %22 = sbr.rel (0) target = $region9
    $region8: #{tpu_custom_call.1} parent=1 // pred_region
      %s24 = ssub.s32 256, 256
      %25 = vsyncadd [#allocation6], %s24
      %s27 = sshll.u32 [#allocation5], 4
      %s28 = int_to_ptr.vmem [resolvable:$true] %s27
      %30 = dma.hbm_to_vmem [thread:$0]  %s1, 256, %s28, [#allocation6]
    $region9: #{tpu_custom_call.1} parent=1 // pred_fallthru
      _
    // Predicated region
    $region10: #{tpu_custom_call.1} parent=1 // pred_check
      _
    $region11: #{tpu_custom_call.1} parent=1 // pred_check_branch
      %32 = sbr.rel (0) target = $region13
    $region12: #{tpu_custom_call.1} parent=1 // pred_region
      %s34 = ssub.s32 256, 256
      %35 = vsyncadd [#allocation6], %s34
      %s37 = sshll.u32 [#allocation7], 4
      %s38 = int_to_ptr.vmem [resolvable:$true] %s37
      %40 = dma.hbm_to_vmem [thread:$0]  %s2, 256, %s38, [#allocation6]
    $region13: #{tpu_custom_call.1} parent=1 // pred_fallthru
      _
    // Predicated region
    $region14: #{tpu_custom_call.1} parent=1 // pred_check
      _
    $region15: #{tpu_custom_call.1} parent=1 // pred_check_branch
      %42 = sbr.rel (0) target = $region17
    $region16: #{tpu_custom_call.1} parent=1 // pred_region
      %43 = dma.done [#allocation3], 32
    $region17: #{tpu_custom_call.1} parent=1 // pred_fallthru
      _
    // Predicated region
    $region18: #{tpu_custom_call.1} parent=1 // pred_check
      _
    $region19: #{tpu_custom_call.1} parent=1 // pred_check_branch
      %45 = sbr.rel (0) target = $region21
    $region20: #{tpu_custom_call.1} parent=1 // pred_region
      %46 = dma.done [#allocation6], 256
    $region21: #{tpu_custom_call.1} parent=1 // pred_fallthru
      _
    // Predicated region
    $region22: #{tpu_custom_call.1} parent=1 // pred_check
      _
    $region23: #{tpu_custom_call.1} parent=1 // pred_check_branch
      %48 = sbr.rel (0) target = $region25
    $region24: #{tpu_custom_call.1} parent=1 // pred_region
      %49 = dma.done [#allocation6], 256
    $region25: #{tpu_custom_call.1} parent=1 // pred_fallthru
      _
    %v50 = vld [vmem:[#allocation2] sm:$0x3]
    %vm51 = vcmp.ne.f32.partialorder %v50, 0.0
    %v52 = vld [vmem:[#allocation5] sm:$0xff]
    %v53 = vld [vmem:[#allocation5 + $0x8] sm:$0xff]
    %v54 = vld [vmem:[#allocation7] sm:$0xff]
    %v55 = vld [vmem:[#allocation7 + $0x8] sm:$0xff]
    %v56 = vsel %vm51, 1, 0
    %v57 = vlaneseq
    %v58 = vshrl.u32 %v57, 7
    %v59 = vsub.s32 0, %v58
    %v60 = vrot.slane %v56, %v59
    %v61 = vlaneseq
    %v62 = vshrl.u32 %v61, 7
    %v63 = vsub.s32 1, %v62
    %v64 = vrot.slane %v56, %v63
    %vm65 = vcmp.eq.s32.totalorder %v60, 1
    %vm66 = vcmp.eq.s32.totalorder %v64, 1
    %v67 = vsel %vm65, %v52, %v54
    %v68 = vsel %vm66, %v53, %v55
    %69 = vst [vmem:[#allocation8] sm:$0xff] %v67
    %70 = vst [vmem:[#allocation8 + $0x8] sm:$0xff] %v68
    // Predicated region
    $region26: #{tpu_custom_call.1} parent=1 // pred_check
      _
    $region27: #{tpu_custom_call.1} parent=1 // pred_check_branch
      %72 = sbr.rel (0) target = $region29
    $region28: #{tpu_custom_call.1} parent=1 // pred_region
      %s74 = ssub.s32 256, 256
      %75 = vsyncadd [#allocation4], %s74
      %s77 = sshll.u32 [#allocation8], 4
      %s78 = int_to_ptr.vmem [resolvable:$true] %s77
      %80 = dma.vmem_to_hbm [thread:$0]  %s78, 256, %s3, [#allocation4]
    $region29: #{tpu_custom_call.1} parent=1 // pred_fallthru
      _
    // Predicated region
    $region30: #{tpu_custom_call.1} parent=1 // pred_check
      _
    $region31: #{tpu_custom_call.1} parent=1 // pred_check_branch
      %82 = sbr.rel (0) target = $region33
    $region32: #{tpu_custom_call.1} parent=1 // pred_region
      %83 = dma.done [#allocation4], 256
    $region33: #{tpu_custom_call.1} parent=1 // pred_fallthru
      _
    %84 = vsyncpa [#allocation3], 1
    %85 = vsyncpa [#allocation6], 1
    %86 = vsyncpa [#allocation4], 1

</llo_original>
